<compile_context>
chip_gen: v6e
topology: v6e:2x2x1
jax: 0.10.0
libtpu: 0.0.40
codegen_flags: <defaults>
</compile_context>

<pallas_src>
import jax
import jax.numpy as jnp
from jax.experimental import pallas as pl
from jax.experimental.pallas import tpu as pltpu

_SUBLANE = 8  # sublane granularity for the batch (second-to-last) dim


def _round_up(n, m):
    return ((n + m - 1) // m) * m


def language_cls_kernel(x_ref, w_ref, b_ref, o_ref):
    # Dropout in eval mode is the identity, so the hot path is:
    #   y = x @ W + b ; LeakyReLU(0.01)
    # TODO(synk): training-mode dropout (p=0.5) would use pltpu.prng_seed /
    # pltpu.prng_random_bits; omitted because probing runs the module in eval.
    x = x_ref[...]                                        # (tile_b, D)
    w = w_ref[...]                                        # (D, C)
    b = b_ref[...]                                        # (1, C)
    y = jnp.dot(x, w, preferred_element_type=jnp.float32) + b
    # LeakyReLU(0.01): max(y, 0.01*y) == y if y > 0 else 0.01*y.
    o_ref[...] = jnp.maximum(y, 0.01 * y).astype(o_ref.dtype)


def language_cls_forward(x, w, b, *, max_tile_b=4096, min_grid_steps=4,
                         use_bf16_inputs=False):
    """x: (B, D), w: (D, C), b: (1, C) or (C,) -> (B, C) f32."""
    B, D = x.shape
    C = w.shape[1]

    # Optional bf16 cast for the HBM-read-dominated operands (MXU consumes
    # bf16 natively with f32 accumulation on v6e/v7x). Off by default.
    in_dtype = jnp.bfloat16 if use_bf16_inputs else jnp.float32
    x_in = x.astype(in_dtype)
    w_in = w.astype(in_dtype)
    b_in = b.reshape(1, C).astype(jnp.float32)

    # --- Tile selection -----------------------------------------------------
    # Sublane-aligned, capped by max_tile_b, and also capped so that large B
    # produces >= min_grid_steps grid steps (v7x megacore sharding + pipelining).
    b_rounded = _round_up(B, _SUBLANE)
    target = _round_up(pl.cdiv(B, min_grid_steps), _SUBLANE)
    tile_b = max(_SUBLANE, min(max_tile_b, b_rounded, target))

    grid = (pl.cdiv(B, tile_b),)   # Pallas masks the OOB tail tile's stores.

    in_bytes = jnp.dtype(in_dtype).itemsize
    cost = pl.CostEstimate(
        flops=2 * B * D * C,
        transcendentals=0,
        bytes_accessed=(B * D * in_bytes      # x read
                        + D * C * in_bytes    # w read
                        + C * 4               # b read
                        + B * C * 4),         # out write
    )

    out = pl.pallas_call(
        language_cls_kernel,
        out_shape=jax.ShapeDtypeStruct((B, C), jnp.float32),
        grid=grid,
        in_specs=[
            pl.BlockSpec((tile_b, D), lambda i: (i, 0)),   # x: tiled over batch
            pl.BlockSpec((D, C), lambda i: (0, 0)),        # w: resident
            pl.BlockSpec((1, C), lambda i: (0, 0)),        # b: resident
        ],
        out_specs=pl.BlockSpec((tile_b, C), lambda i: (i, 0)),
        compiler_params=pltpu.CompilerParams(
            dimension_semantics=("parallel",),             # shard batch on v7x
        ),
        cost_estimate=cost,
    )(x_in, w_in, b_in)

    return out


def reference_forward(x, w, b):
    y = x @ w + b
    return jnp.where(y > 0, y, 0.01 * y)


if __name__ == "__main__":
    # Small shapes consistent with the module: batch=8, input_size=32, classes=4.
    key = jax.random.PRNGKey(0)
    kx, kw, kb = jax.random.split(key, 3)

    batch, input_size, num_classes = 8, 32, 4

    x = jax.random.normal(kx, (batch, input_size), dtype=jnp.float32)
    # Deterministic parameter init (mimics nn.Linear's uniform init range).
    bound = 1.0 / (input_size ** 0.5)
    w = jax.random.uniform(kw, (input_size, num_classes), dtype=jnp.float32,
                           minval=-bound, maxval=bound)
    b = jax.random.uniform(kb, (1, num_classes), dtype=jnp.float32,
                           minval=-bound, maxval=bound)

    out = language_cls_forward(x, w, b)
    out = jax.block_until_ready(out)

    ref = reference_forward(x, w, b)
    assert out.shape == (batch, num_classes)
    assert jnp.allclose(out, ref, atol=1e-5, rtol=1e-5)

    print("KERNEL_OK")
</pallas_src>

<mosaic_0001>
module attributes {stable_mosaic.version = 11 : i64} {
  func.func @language_cls_kernel(%arg0: i32, %arg1: memref<8x32xf32, #tpu.memory_space<vmem>>, %arg2: memref<32x4xf32, #tpu.memory_space<vmem>>, %arg3: memref<1x4xf32, #tpu.memory_space<vmem>>, %arg4: memref<8x4xf32, #tpu.memory_space<vmem>>) attributes {dimension_semantics = [#tpu.dimension_semantics<parallel>], iteration_bounds = array<i64: 1>, scalar_prefetch = 0 : i64, scratch_operands = 0 : i64, tpu.core_type = #tpu.core_type<tc>, window_params = [{transform_indices = @transform_0, window_bounds = array<i64: 8, 32>}, {pipeline_mode = #tpu.pipeline_mode<synchronous>, transform_indices = @transform_1, window_bounds = array<i64: 32, 4>}, {pipeline_mode = #tpu.pipeline_mode<synchronous>, transform_indices = @transform_2, window_bounds = array<i64: 1, 4>}, {transform_indices = @transform_3, window_bounds = array<i64: 8, 4>}]} {
    %c0 = arith.constant 0 : index
    %c0_0 = arith.constant 0 : index
    %0 = vector.load %arg1[%c0, %c0_0] : memref<8x32xf32, #tpu.memory_space<vmem>>, vector<8x32xf32>
    %c0_1 = arith.constant 0 : index
    %c0_2 = arith.constant 0 : index
    %1 = vector.load %arg2[%c0_1, %c0_2] : memref<32x4xf32, #tpu.memory_space<vmem>>, vector<32x4xf32>
    %c0_3 = arith.constant 0 : index
    %c0_4 = arith.constant 0 : index
    %2 = vector.load %arg3[%c0_3, %c0_4] : memref<1x4xf32, #tpu.memory_space<vmem>>, vector<1x4xf32>
    %cst = arith.constant dense<0.000000e+00> : vector<8x4xf32>
    %3 = tpu.matmul %0, %1, %cst {dimension_numbers = #tpu.dot_dimension_numbers<[1], [0], [0], [1], [0, 0, 1, 1], [], []>} : vector<8x32xf32>, vector<32x4xf32>, vector<8x4xf32> -> vector<8x4xf32>
    %4 = vector.broadcast %2 : vector<1x4xf32> to vector<8x4xf32>
    %5 = arith.addf %3, %4 : vector<8x4xf32>
    %cst_5 = arith.constant 0.00999999977 : f32
    %6 = vector.broadcast %cst_5 : f32 to vector<8x4xf32>
    %7 = arith.mulf %6, %5 : vector<8x4xf32>
    %8 = arith.maximumf %5, %7 : vector<8x4xf32>
    %c0_6 = arith.constant 0 : index
    %c0_7 = arith.constant 0 : index
    %9 = vector.load %arg4[%c0_6, %c0_7] : memref<8x4xf32, #tpu.memory_space<vmem>>, vector<8x4xf32>
    tpu.vector_store %arg4[%c0_6, %c0_7], %8 {strides = array<i32>} : memref<8x4xf32, #tpu.memory_space<vmem>>, vector<8x4xf32>,
    return
  }
  func.func @transform_0(%arg0: i32) -> (i32, i32) {
    %c0_i32 = arith.constant 0 : i32
    %c0_i32_0 = arith.constant 0 : i32
    return %arg0, %c0_i32 : i32, i32
  }
  func.func @transform_1(%arg0: i32) -> (i32, i32) {
    %c0_i32 = arith.constant 0 : i32
    %c0_i32_0 = arith.constant 0 : i32
    %c0_i32_1 = arith.constant 0 : i32
    return %c0_i32, %c0_i32_0 : i32, i32
  }
  func.func @transform_2(%arg0: i32) -> (i32, i32) {
    %c0_i32 = arith.constant 0 : i32
    %c0_i32_0 = arith.constant 0 : i32
    %c0_i32_1 = arith.constant 0 : i32
    return %c0_i32, %c0_i32_0 : i32, i32
  }
  func.func @transform_3(%arg0: i32) -> (i32, i32) {
    %c0_i32 = arith.constant 0 : i32
    %c0_i32_0 = arith.constant 0 : i32
    return %arg0, %c0_i32 : i32, i32
  }
}

</mosaic_0001>

<llo_original>
// kernel: tpu_custom_call.1
$region0: #{tpu_custom_call.1}
  #allocation0 [shape = 'u32[]', space=smem, size = 0x4, offset = 0x4, fixed_abs, tag = 'smem constant byte address 0x4 - core index']
  #allocation1 [shape = 'u32[144,128]{1,0:T(1,128)}', space=vmem, size = 0x12000, scoped, tag = 'internal scratch']
  %s0 = inlined_call_operand.vmem [shape: f32[8,32], index: 0, kind: input, shape index: {}]
  %s1 = inlined_call_operand.vmem [shape: f32[32,4], index: 1, kind: input, shape index: {}]
  %s2 = inlined_call_operand.vmem [shape: f32[1,4], index: 2, kind: input, shape index: {}]
  %s3 = inlined_call_operand.vmem [shape: f32[8,4], index: 3, kind: output, shape index: {}]
  %s4 = sld [smem:[#allocation0]]
  $region22: #{tpu_custom_call.1} parent=0
    _
  %s6 = ssub.s32 1, %s4
  %s7 = scalar_select 0, %s6, %s4
  // Predicated region
  $region2: #{tpu_custom_call.1} parent=0 // pred_check
    _
  $region3: #{tpu_custom_call.1} parent=0 // pred_check_branch
    %9 = sbr.rel (0) target = $region5
  $region4: #{tpu_custom_call.1} parent=0 // pred_region
    _
  $region5: #{tpu_custom_call.1} parent=0 // pred_fallthru
    _
  // Predicated region
  $region6: #{tpu_custom_call.1} parent=0 // pred_check
    _
  $region7: #{tpu_custom_call.1} parent=0 // pred_check_branch
    %11 = sbr.rel (0) target = $region9
  $region8: #{tpu_custom_call.1} parent=0 // pred_region
    _
  $region9: #{tpu_custom_call.1} parent=0 // pred_fallthru
    _
  // Predicated region
  $region10: #{tpu_custom_call.1} parent=0 // pred_check
    _
  $region11: #{tpu_custom_call.1} parent=0 // pred_check_branch
    %13 = sbr.rel (0) target = $region13
  $region12: #{tpu_custom_call.1} parent=0 // pred_region
    _
  $region13: #{tpu_custom_call.1} parent=0 // pred_fallthru
    _
  %v14 = vld [vmem:[%s0] sm:$0xff]
  %v15 = vld [vmem:[%s1] sm:$0xff]
  %v16 = vld [vmem:[%s1 + $0x8] sm:$0xff]
  %v17 = vld [vmem:[%s1 + $0x10] sm:$0xff]
  %v18 = vld [vmem:[%s1 + $0x18] sm:$0xff]
  %v19 = vld [vmem:[%s2] sm:$0x1]
  %v21 = vlaneseq
  %v22 = vshrl.u32 %v21, 7
  %v23 = vsub.s32 0, %v22
  %v24 = vrot.slane %v19, %v23
  %vm26 = vcmask 261120
  %v28 = vsel %vm26, %v14, 0
  %30 = vmatprep.subr.mxu0 0.0
  %31 = vmatpush1.msra.mxu0 0.0
  %32 = vmatprep.subr.mxu0 0.0
  %33 = vmatpush1.msra.mxu0 0.0
  %34 = vmatprep.subr.mxu0 0.0
  %35 = vmatpush1.msra.mxu0 0.0
  %36 = vmatprep.subr.mxu0 0.0
  %37 = vmatpush1.msra.mxu0 0.0
  %38 = vmatprep.subr.mxu0 0.0
  %39 = vmatpush1.msra.mxu0 0.0
  %40 = vmatprep.subr.mxu0 0.0
  %41 = vmatpush1.msra.mxu0 0.0
  %42 = vmatprep.subr.mxu0 0.0
  %43 = vmatpush1.msra.mxu0 0.0
  %44 = vmatprep.subr.mxu0 0.0
  %45 = vmatpush1.msra.mxu0 0.0
  %46 = vmatprep.subr.mxu0 0.0
  %47 = vmatpush1.msra.mxu0 0.0
  %48 = vmatprep.subr.mxu0 0.0
  %49 = vmatpush1.msra.mxu0 0.0
  %50 = vmatprep.subr.mxu0 0.0
  %51 = vmatpush1.msra.mxu0 0.0
  %52 = vmatprep.subr.mxu0 0.0
  %53 = vmatpush1.msra.mxu0 0.0
  %54 = vmatprep.subr.mxu0 0.0
  %55 = vmatpush1.msra.mxu0 %v18
  %56 = vmatprep.subr.mxu0 0.0
  %57 = vmatpush1.msra.mxu0 %v17
  %58 = vmatprep.subr.mxu0 0.0
  %59 = vmatpush1.msra.mxu0 %v16
  %60 = vmatprep.subr.mxu0 0.0
  %61 = vmatpush1.msra.mxu0 %v15
  %62 = vmatprep.subr.mxu0 0.0
  %63 = vmatpush2.msra.mxu0 0.0
  %64 = vmatprep.subr.mxu0 0.0
  %65 = vmatpush2.msra.mxu0 0.0
  %66 = vmatprep.subr.mxu0 0.0
  %67 = vmatpush2.msra.mxu0 0.0
  %68 = vmatprep.subr.mxu0 0.0
  %69 = vmatpush2.msra.mxu0 0.0
  %70 = vmatprep.subr.mxu0 0.0
  %71 = vmatpush2.msra.mxu0 0.0
  %72 = vmatprep.subr.mxu0 0.0
  %73 = vmatpush2.msra.mxu0 0.0
  %74 = vmatprep.subr.mxu0 0.0
  %75 = vmatpush2.msra.mxu0 0.0
  %76 = vmatprep.subr.mxu0 0.0
  %77 = vmatpush2.msra.mxu0 0.0
  %78 = vmatprep.subr.mxu0 0.0
  %79 = vmatpush2.msra.mxu0 0.0
  %80 = vmatprep.subr.mxu0 0.0
  %81 = vmatpush2.msra.mxu0 0.0
  %82 = vmatprep.subr.mxu0 0.0
  %83 = vmatpush2.msra.mxu0 0.0
  %84 = vmatprep.subr.mxu0 0.0
  %85 = vmatpush2.msra.mxu0 0.0
  %86 = vmatprep.subr.mxu0 0.0
  %87 = vmatpush2.msra.mxu0 0.0
  %88 = vmatprep.subr.mxu0 0.0
  %89 = vmatpush2.msra.mxu0 0.0
  %90 = vmatprep.subr.mxu0 0.0
  %91 = vmatpush2.msra.mxu0 0.0
  %92 = vmatprep.subr.mxu0 0.0
  %93 = vmatpush2.msra.mxu0 0.0
  %94 = vmatprep.mubr.f32.mxu0 0.0
  %95 = vmatmul.mubr.f32.gmra.mxu0 %v28
  %v96 = vpop.f32.mrf.mxu0
  %v97 = vadd.f32 %v24, %v96
  %v98 = vpop.f32.mrf.mxu0
  %99 = vdwg.mxu0
  %v100 = vmul.f32 %v97, 0.01
  %v101 = vmax.f32 %v97, %v100
  %vm102 = vcmask 31744
  %103 = vst.msk [vmem:[%s3] sm:$0xff] %vm102, %v101
  // Predicated region
  $region14: #{tpu_custom_call.1} parent=0 // pred_check
    _
  $region15: #{tpu_custom_call.1} parent=0 // pred_check_branch
    %105 = sbr.rel (0) target = $region17
  $region16: #{tpu_custom_call.1} parent=0 // pred_region
    _
  $region17: #{tpu_custom_call.1} parent=0 // pred_fallthru
    _
  // Predicated region
  $region18: #{tpu_custom_call.1} parent=0 // pred_check
    _
  $region19: #{tpu_custom_call.1} parent=0 // pred_check_branch
    %107 = sbr.rel (0) target = $region21
  $region20: #{tpu_custom_call.1} parent=0 // pred_region
    _
  $region21: #{tpu_custom_call.1} parent=0 // pred_fallthru
    _

</llo_original>
